<compile_context>
chip_gen: v5e
topology: v5e:2x2
jax: 0.10.0
libtpu: 0.0.40
codegen_flags: <defaults>
</compile_context>

<pallas_src>
import functools

import jax
import jax.numpy as jnp
from jax import lax
from jax.experimental import pallas as pl
from jax.experimental.pallas import tpu as pltpu


def _round_up(x, m):
    return ((x + m - 1) // m) * m


def _largest_divisor_leq(n, cap):
    cap = max(1, min(int(cap), n))
    for d in range(cap, 0, -1):
        if n % d == 0:
            return d
    return 1


def _pick_rows_per_block(bc, per_row_bytes, x_row_bytes, *,
                         max_block_bytes=6 << 20,
                         min_block_bytes=512 << 10,
                         target_steps=8):
    """Rows of the (B*C) axis per grid block.

    Candidates are multiples of 8 dividing bc (so the 2-D qc/out blocks keep a
    legal second-minor size) plus bc itself (a full dim is always legal).
    """
    cands = [d for d in range(8, bc, 8) if bc % d == 0] + [bc]
    fits = [d for d in cands if d * per_row_bytes <= max_block_bytes]
    if not fits:
        return min(cands)            # caller raises vmem_limit_bytes if needed
    # Prefer >= target_steps grid steps (pipeline overlap + v7x 2-TC split)
    # as long as each block stays reasonably large.
    pref = [d for d in fits
            if bc // d >= target_steps and d * x_row_bytes >= min_block_bytes]
    if pref:
        return max(pref)
    pref2 = [d for d in fits
             if bc // d >= 2 and d * x_row_bytes >= min_block_bytes]
    if pref2:
        return max(pref2)
    return max(fits)


def _process_chunk(x_ref, qc_ref, out_ref, c0, chunk, *, k, W, D):
    _, H, WD = x_ref.shape
    hw = H - k + 1          # window height (#patch rows of nn.Unfold(k))
    ww = W - k + 1          # window width
    kD = k * D
    rows = pl.ds(c0, chunk)

    xc = x_ref[rows].astype(jnp.float32)        # (chunk, H, W*D)
    qc = qc_ref[rows].astype(jnp.float32)       # (chunk, k*D) centre-pixel query

    pieces = []
    for p in range(k):
        # H-direction window: one reduction over rows [p, p+hw).
        band = jnp.sum(xc[:, p:p + hw, :], axis=1)          # (chunk, W*D) f32
        # W-direction windows for ALL k column offsets at once (lane groups of
        # width D): acc[:, q*D + d] = sum_{w in [q, q+ww)} band[:, w*D + d].
        acc = band[:, 0:kD]
        for j in range(1, ww):
            acc = acc + band[:, j * D:j * D + kD]
        pieces.append(acc * qc)                             # (chunk, k*D)

    res = jnp.concatenate(pieces, axis=1)                   # (chunk, k*k*D)
    out_ref[rows] = res.astype(out_ref.dtype)


def _appearance_kernel(x_ref, qc_ref, out_ref, *, k, W, D, chunk):
    tbc = x_ref.shape[0]
    nchunks = tbc // chunk
    if nchunks <= 8:
        # Fully static slices; short unroll keeps the scheduler's view simple.
        for ci in range(nchunks):
            _process_chunk(x_ref, qc_ref, out_ref, ci * chunk, chunk,
                           k=k, W=W, D=D)
    else:
        def body(ci, carry):
            c0 = pl.multiple_of(ci * chunk, chunk)
            _process_chunk(x_ref, qc_ref, out_ref, c0, chunk, k=k, W=W, D=D)
            return carry
        lax.fori_loop(0, nchunks, body, 0)


def appearance_composability(key_map, query_map, k):
    """key_map, query_map: (B, C, H, W, D) -> out: (B, C, k, k, D) float32."""
    B, C, H, W, D = key_map.shape
    assert query_map.shape == key_map.shape
    assert 1 <= k <= H and k <= W
    BC = B * C
    WD = W * D
    kD = k * D

    # Free, contiguous reshape: no HBM copy / transpose of the key tensor.
    x2 = key_map.reshape(BC, H, WD)
    # Only the centre pixel of query_map is ever used -> gather + tile (tiny).
    qc = query_map[:, :, H // 2, W // 2, :].reshape(BC, D)
    qc_t = jnp.tile(qc, (1, k))                              # (BC, k*D)

    elem = jnp.dtype(key_map.dtype).itemsize
    # Per-row VMEM footprints (with (8,128) tile padding on the minor dims).
    x_row = _round_up(H, 8) * _round_up(WD, 128) * elem
    q_row = _round_up(kD, 128) * elem
    o_row = _round_up(k * kD, 128) * 4
    per_row = x_row + q_row + o_row

    tbc = _pick_rows_per_block(BC, per_row, x_row)
    grid = (BC // tbc,)

    # In-kernel chunk: keep the live f32 working set around <= ~64 KiB.
    row_f32 = _round_up(H, 8) * _round_up(WD, 128) * 4
    chunk = _largest_divisor_leq(tbc, max(1, (64 * 1024) // row_f32))

    vmem_est = 2 * tbc * per_row + (1 << 20)                 # double-buffered
    compiler_kwargs = dict(dimension_semantics=("parallel",))
    if vmem_est > (14 << 20):
        compiler_kwargs["vmem_limit_bytes"] = int(min(vmem_est + (2 << 20),
                                                      48 << 20))

    kernel = functools.partial(_appearance_kernel, k=k, W=W, D=D, chunk=chunk)
    out_flat = pl.pallas_call(
        kernel,
        out_shape=jax.ShapeDtypeStruct((BC, k * k * D), jnp.float32),
        grid=grid,
        in_specs=[
            pl.BlockSpec((tbc, H, WD), lambda n: (n, 0, 0)),
            pl.BlockSpec((tbc, kD), lambda n: (n, 0)),
        ],
        out_specs=pl.BlockSpec((tbc, k * k * D), lambda n: (n, 0)),
        compiler_params=pltpu.CompilerParams(**compiler_kwargs),
    )(x2, qc_t)

    # (BC, k*k*D) -> (B, C, k, k, D): contiguous split, free.
    return out_flat.reshape(B, C, k, k, D)


def _reference(key_map, query_map, k):
    """Pure-JAX reference mirroring the torch forward."""
    B, C, H, W, D = key_map.shape
    hw, ww = H - k + 1, W - k + 1
    qc = query_map[:, :, H // 2, W // 2, :]                  # (B, C, D)
    out = jnp.zeros((B, C, k, k, D), jnp.float32)
    for p in range(k):
        for q in range(k):
            wsum = jnp.sum(key_map[:, :, p:p + hw, q:q + ww, :], axis=(2, 3))
            out = out.at[:, :, p, q, :].set(wsum * qc)
    return out


if __name__ == "__main__":
    B, C, H, W, D = 2, 4, 16, 16, 8
    k = 3

    rng = jax.random.PRNGKey(0)
    r1, r2 = jax.random.split(rng)
    key_map = jax.random.normal(r1, (B, C, H, W, D), dtype=jnp.float32)
    query_map = jax.random.normal(r2, (B, C, H, W, D), dtype=jnp.float32)

    out = appearance_composability(key_map, query_map, k)
    out = jax.block_until_ready(out)

    ref = _reference(key_map, query_map, k)
    assert out.shape == (B, C, k, k, D)
    assert out.dtype == jnp.float32
    assert jnp.allclose(out, ref, atol=1e-4, rtol=1e-4), "mismatch vs reference"
    print("KERNEL_OK")
</pallas_src>

<mosaic_0001>
module attributes {stable_mosaic.version = 11 : i64} {
  func.func @_appearance_kernel(%arg0: i32, %arg1: memref<8x16x128xf32, #tpu.memory_space<vmem>>, %arg2: memref<8x24xf32, #tpu.memory_space<vmem>>, %arg3: memref<8x72xf32, #tpu.memory_space<vmem>>) attributes {dimension_semantics = [#tpu.dimension_semantics<parallel>], iteration_bounds = array<i64: 1>, scalar_prefetch = 0 : i64, scratch_operands = 0 : i64, tpu.core_type = #tpu.core_type<tc>, window_params = [{transform_indices = @transform_0, window_bounds = array<i64: 8, 16, 128>}, {transform_indices = @transform_1, window_bounds = array<i64: 8, 24>}, {transform_indices = @transform_2, window_bounds = array<i64: 8, 72>}]} {
    %c0 = arith.constant 0 : index
    %c0_0 = arith.constant 0 : index
    %c0_1 = arith.constant 0 : index
    %0 = vector.load %arg1[%c0, %c0_0, %c0_1] : memref<8x16x128xf32, #tpu.memory_space<vmem>>, vector<8x16x128xf32>
    %c0_2 = arith.constant 0 : index
    %c0_3 = arith.constant 0 : index
    %1 = vector.load %arg2[%c0_2, %c0_3] : memref<8x24xf32, #tpu.memory_space<vmem>>, vector<8x24xf32>
    %2 = vector.extract_strided_slice %0 {offsets = [0, 0, 0], sizes = [8, 14, 128], strides = [1, 1, 1]} : vector<8x16x128xf32> to vector<8x14x128xf32>
    %cst = arith.constant dense<0.000000e+00> : vector<8x128xf32>
    %3 = vector.multi_reduction <add>, %2, %cst [1] : vector<8x14x128xf32> to vector<8x128xf32>
    %4 = vector.extract_strided_slice %3 {offsets = [0, 0], sizes = [8, 24], strides = [1, 1]} : vector<8x128xf32> to vector<8x24xf32>
    %5 = vector.extract_strided_slice %3 {offsets = [0, 8], sizes = [8, 24], strides = [1, 1]} : vector<8x128xf32> to vector<8x24xf32>
    %6 = arith.addf %4, %5 : vector<8x24xf32>
    %7 = vector.extract_strided_slice %3 {offsets = [0, 16], sizes = [8, 24], strides = [1, 1]} : vector<8x128xf32> to vector<8x24xf32>
    %8 = arith.addf %6, %7 : vector<8x24xf32>
    %9 = vector.extract_strided_slice %3 {offsets = [0, 24], sizes = [8, 24], strides = [1, 1]} : vector<8x128xf32> to vector<8x24xf32>
    %10 = arith.addf %8, %9 : vector<8x24xf32>
    %11 = vector.extract_strided_slice %3 {offsets = [0, 32], sizes = [8, 24], strides = [1, 1]} : vector<8x128xf32> to vector<8x24xf32>
    %12 = arith.addf %10, %11 : vector<8x24xf32>
    %13 = vector.extract_strided_slice %3 {offsets = [0, 40], sizes = [8, 24], strides = [1, 1]} : vector<8x128xf32> to vector<8x24xf32>
    %14 = arith.addf %12, %13 : vector<8x24xf32>
    %15 = vector.extract_strided_slice %3 {offsets = [0, 48], sizes = [8, 24], strides = [1, 1]} : vector<8x128xf32> to vector<8x24xf32>
    %16 = arith.addf %14, %15 : vector<8x24xf32>
    %17 = vector.extract_strided_slice %3 {offsets = [0, 56], sizes = [8, 24], strides = [1, 1]} : vector<8x128xf32> to vector<8x24xf32>
    %18 = arith.addf %16, %17 : vector<8x24xf32>
    %19 = vector.extract_strided_slice %3 {offsets = [0, 64], sizes = [8, 24], strides = [1, 1]} : vector<8x128xf32> to vector<8x24xf32>
    %20 = arith.addf %18, %19 : vector<8x24xf32>
    %21 = vector.extract_strided_slice %3 {offsets = [0, 72], sizes = [8, 24], strides = [1, 1]} : vector<8x128xf32> to vector<8x24xf32>
    %22 = arith.addf %20, %21 : vector<8x24xf32>
    %23 = vector.extract_strided_slice %3 {offsets = [0, 80], sizes = [8, 24], strides = [1, 1]} : vector<8x128xf32> to vector<8x24xf32>
    %24 = arith.addf %22, %23 : vector<8x24xf32>
    %25 = vector.extract_strided_slice %3 {offsets = [0, 88], sizes = [8, 24], strides = [1, 1]} : vector<8x128xf32> to vector<8x24xf32>
    %26 = arith.addf %24, %25 : vector<8x24xf32>
    %27 = vector.extract_strided_slice %3 {offsets = [0, 96], sizes = [8, 24], strides = [1, 1]} : vector<8x128xf32> to vector<8x24xf32>
    %28 = arith.addf %26, %27 : vector<8x24xf32>
    %29 = vector.extract_strided_slice %3 {offsets = [0, 104], sizes = [8, 24], strides = [1, 1]} : vector<8x128xf32> to vector<8x24xf32>
    %30 = arith.addf %28, %29 : vector<8x24xf32>
    %31 = arith.mulf %30, %1 : vector<8x24xf32>
    %32 = vector.extract_strided_slice %0 {offsets = [0, 1, 0], sizes = [8, 14, 128], strides = [1, 1, 1]} : vector<8x16x128xf32> to vector<8x14x128xf32>
    %cst_4 = arith.constant dense<0.000000e+00> : vector<8x128xf32>
    %33 = vector.multi_reduction <add>, %32, %cst_4 [1] : vector<8x14x128xf32> to vector<8x128xf32>
    %34 = vector.extract_strided_slice %33 {offsets = [0, 0], sizes = [8, 24], strides = [1, 1]} : vector<8x128xf32> to vector<8x24xf32>
    %35 = vector.extract_strided_slice %33 {offsets = [0, 8], sizes = [8, 24], strides = [1, 1]} : vector<8x128xf32> to vector<8x24xf32>
    %36 = arith.addf %34, %35 : vector<8x24xf32>
    %37 = vector.extract_strided_slice %33 {offsets = [0, 16], sizes = [8, 24], strides = [1, 1]} : vector<8x128xf32> to vector<8x24xf32>
    %38 = arith.addf %36, %37 : vector<8x24xf32>
    %39 = vector.extract_strided_slice %33 {offsets = [0, 24], sizes = [8, 24], strides = [1, 1]} : vector<8x128xf32> to vector<8x24xf32>
    %40 = arith.addf %38, %39 : vector<8x24xf32>
    %41 = vector.extract_strided_slice %33 {offsets = [0, 32], sizes = [8, 24], strides = [1, 1]} : vector<8x128xf32> to vector<8x24xf32>
    %42 = arith.addf %40, %41 : vector<8x24xf32>
    %43 = vector.extract_strided_slice %33 {offsets = [0, 40], sizes = [8, 24], strides = [1, 1]} : vector<8x128xf32> to vector<8x24xf32>
    %44 = arith.addf %42, %43 : vector<8x24xf32>
    %45 = vector.extract_strided_slice %33 {offsets = [0, 48], sizes = [8, 24], strides = [1, 1]} : vector<8x128xf32> to vector<8x24xf32>
    %46 = arith.addf %44, %45 : vector<8x24xf32>
    %47 = vector.extract_strided_slice %33 {offsets = [0, 56], sizes = [8, 24], strides = [1, 1]} : vector<8x128xf32> to vector<8x24xf32>
    %48 = arith.addf %46, %47 : vector<8x24xf32>
    %49 = vector.extract_strided_slice %33 {offsets = [0, 64], sizes = [8, 24], strides = [1, 1]} : vector<8x128xf32> to vector<8x24xf32>
    %50 = arith.addf %48, %49 : vector<8x24xf32>
    %51 = vector.extract_strided_slice %33 {offsets = [0, 72], sizes = [8, 24], strides = [1, 1]} : vector<8x128xf32> to vector<8x24xf32>
    %52 = arith.addf %50, %51 : vector<8x24xf32>
    %53 = vector.extract_strided_slice %33 {offsets = [0, 80], sizes = [8, 24], strides = [1, 1]} : vector<8x128xf32> to vector<8x24xf32>
    %54 = arith.addf %52, %53 : vector<8x24xf32>
    %55 = vector.extract_strided_slice %33 {offsets = [0, 88], sizes = [8, 24], strides = [1, 1]} : vector<8x128xf32> to vector<8x24xf32>
    %56 = arith.addf %54, %55 : vector<8x24xf32>
    %57 = vector.extract_strided_slice %33 {offsets = [0, 96], sizes = [8, 24], strides = [1, 1]} : vector<8x128xf32> to vector<8x24xf32>
    %58 = arith.addf %56, %57 : vector<8x24xf32>
    %59 = vector.extract_strided_slice %33 {offsets = [0, 104], sizes = [8, 24], strides = [1, 1]} : vector<8x128xf32> to vector<8x24xf32>
    %60 = arith.addf %58, %59 : vector<8x24xf32>
    %61 = arith.mulf %60, %1 : vector<8x24xf32>
    %62 = vector.extract_strided_slice %0 {offsets = [0, 2, 0], sizes = [8, 14, 128], strides = [1, 1, 1]} : vector<8x16x128xf32> to vector<8x14x128xf32>
    %cst_5 = arith.constant dense<0.000000e+00> : vector<8x128xf32>
    %63 = vector.multi_reduction <add>, %62, %cst_5 [1] : vector<8x14x128xf32> to vector<8x128xf32>
    %64 = vector.extract_strided_slice %63 {offsets = [0, 0], sizes = [8, 24], strides = [1, 1]} : vector<8x128xf32> to vector<8x24xf32>
    %65 = vector.extract_strided_slice %63 {offsets = [0, 8], sizes = [8, 24], strides = [1, 1]} : vector<8x128xf32> to vector<8x24xf32>
    %66 = arith.addf %64, %65 : vector<8x24xf32>
    %67 = vector.extract_strided_slice %63 {offsets = [0, 16], sizes = [8, 24], strides = [1, 1]} : vector<8x128xf32> to vector<8x24xf32>
    %68 = arith.addf %66, %67 : vector<8x24xf32>
    %69 = vector.extract_strided_slice %63 {offsets = [0, 24], sizes = [8, 24], strides = [1, 1]} : vector<8x128xf32> to vector<8x24xf32>
    %70 = arith.addf %68, %69 : vector<8x24xf32>
    %71 = vector.extract_strided_slice %63 {offsets = [0, 32], sizes = [8, 24], strides = [1, 1]} : vector<8x128xf32> to vector<8x24xf32>
    %72 = arith.addf %70, %71 : vector<8x24xf32>
    %73 = vector.extract_strided_slice %63 {offsets = [0, 40], sizes = [8, 24], strides = [1, 1]} : vector<8x128xf32> to vector<8x24xf32>
    %74 = arith.addf %72, %73 : vector<8x24xf32>
    %75 = vector.extract_strided_slice %63 {offsets = [0, 48], sizes = [8, 24], strides = [1, 1]} : vector<8x128xf32> to vector<8x24xf32>
    %76 = arith.addf %74, %75 : vector<8x24xf32>
    %77 = vector.extract_strided_slice %63 {offsets = [0, 56], sizes = [8, 24], strides = [1, 1]} : vector<8x128xf32> to vector<8x24xf32>
    %78 = arith.addf %76, %77 : vector<8x24xf32>
    %79 = vector.extract_strided_slice %63 {offsets = [0, 64], sizes = [8, 24], strides = [1, 1]} : vector<8x128xf32> to vector<8x24xf32>
    %80 = arith.addf %78, %79 : vector<8x24xf32>
    %81 = vector.extract_strided_slice %63 {offsets = [0, 72], sizes = [8, 24], strides = [1, 1]} : vector<8x128xf32> to vector<8x24xf32>
    %82 = arith.addf %80, %81 : vector<8x24xf32>
    %83 = vector.extract_strided_slice %63 {offsets = [0, 80], sizes = [8, 24], strides = [1, 1]} : vector<8x128xf32> to vector<8x24xf32>
    %84 = arith.addf %82, %83 : vector<8x24xf32>
    %85 = vector.extract_strided_slice %63 {offsets = [0, 88], sizes = [8, 24], strides = [1, 1]} : vector<8x128xf32> to vector<8x24xf32>
    %86 = arith.addf %84, %85 : vector<8x24xf32>
    %87 = vector.extract_strided_slice %63 {offsets = [0, 96], sizes = [8, 24], strides = [1, 1]} : vector<8x128xf32> to vector<8x24xf32>
    %88 = arith.addf %86, %87 : vector<8x24xf32>
    %89 = vector.extract_strided_slice %63 {offsets = [0, 104], sizes = [8, 24], strides = [1, 1]} : vector<8x128xf32> to vector<8x24xf32>
    %90 = arith.addf %88, %89 : vector<8x24xf32>
    %91 = arith.mulf %90, %1 : vector<8x24xf32>
    %92 = tpu.concatenate %31, %61, %91 in 1 : vector<8x24xf32>, vector<8x24xf32>, vector<8x24xf32> -> vector<8x72xf32>
    %c0_6 = arith.constant 0 : index
    %c0_7 = arith.constant 0 : index
    %93 = vector.load %arg3[%c0_6, %c0_7] : memref<8x72xf32, #tpu.memory_space<vmem>>, vector<8x72xf32>
    tpu.vector_store %arg3[%c0_6, %c0_7], %92 {strides = array<i32>} : memref<8x72xf32, #tpu.memory_space<vmem>>, vector<8x72xf32>,
    return
  }
  func.func @transform_0(%arg0: i32) -> (i32, i32, i32) {
    %c0_i32 = arith.constant 0 : i32
    %c0_i32_0 = arith.constant 0 : i32
    %c0_i32_1 = arith.constant 0 : i32
    return %arg0, %c0_i32, %c0_i32_0 : i32, i32, i32
  }
  func.func @transform_1(%arg0: i32) -> (i32, i32) {
    %c0_i32 = arith.constant 0 : i32
    %c0_i32_0 = arith.constant 0 : i32
    return %arg0, %c0_i32 : i32, i32
  }
  func.func @transform_2(%arg0: i32) -> (i32, i32) {
    %c0_i32 = arith.constant 0 : i32
    %c0_i32_0 = arith.constant 0 : i32
    return %arg0, %c0_i32 : i32, i32
  }
}

</mosaic_0001>

<llo_original>
// kernel: tpu_custom_call.1
$region0: #{tpu_custom_call.1}
  #allocation0 [shape = 'u32[]', space=smem, size = 0x4, offset = 0x4, fixed_abs, tag = 'smem constant byte address 0x4 - core index']
  #allocation1 [shape = 'u32[72,128]{1,0:T(1,128)}', space=vmem, size = 0x9000, scoped, tag = 'internal scratch']
  %s0 = inlined_call_operand.hbm [shape: f32[8,16,128], index: 0, kind: input, shape index: {}]
  %s1 = inlined_call_operand.hbm [shape: f32[8,24], index: 1, kind: input, shape index: {}]
  %s2 = inlined_call_operand.hbm [shape: f32[8,72], index: 2, kind: output, shape index: {}]
  %s3 = sld [smem:[#allocation0]]
  $region26: #{tpu_custom_call.1} parent=0
    _
  %s5 = ssub.s32 1, %s3
  %s6 = scalar_select 0, %s5, %s3
  $region1: #{tpu_custom_call.1} parent=0
    #allocation2 [shape = 'u8[65536]{0}', space=vmem, size = 0x10000, scoped, tag = 'input window, operand 0, single buffered']
    #allocation3 [shape = 's32[1]{0}', space=sflag, size = 0x4, scoped, tag = 'scoped memory for tpu_custom_call.1']
    #allocation4 [shape = 's32[1]{0}', space=sflag, size = 0x4, scoped, tag = 'scoped memory for tpu_custom_call.1']
    #allocation5 [shape = 'u8[4096]{0}', space=vmem, size = 0x1000, scoped, tag = 'input window, operand 1, single buffered']
    #allocation6 [shape = 's32[1]{0}', space=sflag, size = 0x4, scoped, tag = 'scoped memory for tpu_custom_call.1']
    #allocation7 [shape = 'u8[4096]{0}', space=vmem, size = 0x1000, scoped, tag = 'output window, operand 0, single buffered']
    %7 = vsyncpa [#allocation3], 0
    %8 = vsyncpa [#allocation6], 0
    %9 = vsyncpa [#allocation4], 0
    // Predicated region
    $region2: #{tpu_custom_call.1} parent=1 // pred_check
      _
    $region3: #{tpu_custom_call.1} parent=1 // pred_check_branch
      %11 = sbr.rel (0) target = $region5
    $region4: #{tpu_custom_call.1} parent=1 // pred_region
      %13 = vsyncadd [#allocation3], 0
      %s14 = sshll.u32 %s0, 4
      %s15 = int_to_ptr.hbm [resolvable:$true] %s14
      %s16 = sshll.u32 [#allocation2], 4
      %s17 = int_to_ptr.vmem [resolvable:$true] %s16
      %22 = dma.hbm_to_vmem [thread:$0]  %s15, 2048, %s17, [#allocation3], 128, 128, 8
    $region5: #{tpu_custom_call.1} parent=1 // pred_fallthru
      _
    // Predicated region
    $region6: #{tpu_custom_call.1} parent=1 // pred_check
      _
    $region7: #{tpu_custom_call.1} parent=1 // pred_check_branch
      %24 = sbr.rel (0) target = $region9
    $region8: #{tpu_custom_call.1} parent=1 // pred_region
      %26 = vsyncadd [#allocation6], 0
      %s28 = sshll.u32 %s1, 4
      %s29 = int_to_ptr.hbm [resolvable:$true] %s28
      %s30 = sshll.u32 [#allocation5], 4
      %s31 = int_to_ptr.vmem [resolvable:$true] %s30
      %33 = dma.hbm_to_vmem [thread:$0]  %s29, 128, %s31, [#allocation6]
    $region9: #{tpu_custom_call.1} parent=1 // pred_fallthru
      _
    // Predicated region
    $region10: #{tpu_custom_call.1} parent=1 // pred_check
      _
    $region11: #{tpu_custom_call.1} parent=1 // pred_check_branch
      %35 = sbr.rel (0) target = $region13
    $region12: #{tpu_custom_call.1} parent=1 // pred_region
      %37 = dma.done [#allocation3], 2048
    $region13: #{tpu_custom_call.1} parent=1 // pred_fallthru
      _
    // Predicated region
    $region14: #{tpu_custom_call.1} parent=1 // pred_check
      _
    $region15: #{tpu_custom_call.1} parent=1 // pred_check_branch
      %39 = sbr.rel (0) target = $region17
    $region16: #{tpu_custom_call.1} parent=1 // pred_region
      %41 = dma.done [#allocation6], 128
    $region17: #{tpu_custom_call.1} parent=1 // pred_fallthru
      _
    %v42 = vld [vmem:[#allocation2] sm:$0xff]
    %v43 = vld [vmem:[#allocation2 + $0x8] sm:$0xff]
    %v44 = vld [vmem:[#allocation2 + $0x10] sm:$0xff]
    %v45 = vld [vmem:[#allocation2 + $0x18] sm:$0xff]
    %v46 = vld [vmem:[#allocation2 + $0x20] sm:$0xff]
    %v47 = vld [vmem:[#allocation2 + $0x28] sm:$0xff]
    %v48 = vld [vmem:[#allocation2 + $0x30] sm:$0xff]
    %v49 = vld [vmem:[#allocation2 + $0x38] sm:$0xff]
    %v50 = vld [vmem:[#allocation2 + $0x40] sm:$0xff]
    %v51 = vld [vmem:[#allocation2 + $0x48] sm:$0xff]
    %v52 = vld [vmem:[#allocation2 + $0x50] sm:$0xff]
    %v53 = vld [vmem:[#allocation2 + $0x58] sm:$0xff]
    %v54 = vld [vmem:[#allocation2 + $0x60] sm:$0xff]
    %v55 = vld [vmem:[#allocation2 + $0x68] sm:$0xff]
    %v56 = vld [vmem:[#allocation2 + $0x70] sm:$0xff]
    %v57 = vld [vmem:[#allocation2 + $0x78] sm:$0xff]
    %v58 = vld [vmem:[#allocation5] sm:$0xff]
    %vm59 = vcmask 1045504
    %v60 = vsel %vm59, %v43, 0.0
    %v61 = vadd.f32 %v42, %v60
    %v62 = vrot.slane %v61, 4
    %v63 = vadd.f32 %v61, %v62
    %v64 = vrot.slane %v63, 2
    %v65 = vadd.f32 %v63, %v64
    %v66 = vrot.slane %v65, 1
    %v67 = vadd.f32 %v65, %v66
    %v68 = vsel %vm59, %v45, 0.0
    %v69 = vadd.f32 %v44, %v68
    %v70 = vrot.slane %v69, 4
    %v71 = vadd.f32 %v69, %v70
    %v72 = vrot.slane %v71, 2
    %v73 = vadd.f32 %v71, %v72
    %v74 = vrot.slane %v73, 1
    %v75 = vadd.f32 %v73, %v74
    %v76 = vsel %vm59, %v47, 0.0
    %v77 = vadd.f32 %v46, %v76
    %v78 = vrot.slane %v77, 4
    %v79 = vadd.f32 %v77, %v78
    %v80 = vrot.slane %v79, 2
    %v81 = vadd.f32 %v79, %v80
    %v82 = vrot.slane %v81, 1
    %v83 = vadd.f32 %v81, %v82
    %v84 = vsel %vm59, %v49, 0.0
    %v85 = vadd.f32 %v48, %v84
    %v86 = vrot.slane %v85, 4
    %v87 = vadd.f32 %v85, %v86
    %v88 = vrot.slane %v87, 2
    %v89 = vadd.f32 %v87, %v88
    %v90 = vrot.slane %v89, 1
    %v91 = vadd.f32 %v89, %v90
    %v92 = vsel %vm59, %v51, 0.0
    %v93 = vadd.f32 %v50, %v92
    %v94 = vrot.slane %v93, 4
    %v95 = vadd.f32 %v93, %v94
    %v96 = vrot.slane %v95, 2
    %v97 = vadd.f32 %v95, %v96
    %v98 = vrot.slane %v97, 1
    %v99 = vadd.f32 %v97, %v98
    %v100 = vsel %vm59, %v53, 0.0
    %v101 = vadd.f32 %v52, %v100
    %v102 = vrot.slane %v101, 4
    %v103 = vadd.f32 %v101, %v102
    %v104 = vrot.slane %v103, 2
    %v105 = vadd.f32 %v103, %v104
    %v106 = vrot.slane %v105, 1
    %v107 = vadd.f32 %v105, %v106
    %v108 = vsel %vm59, %v55, 0.0
    %v109 = vadd.f32 %v54, %v108
    %v110 = vrot.slane %v109, 4
    %v111 = vadd.f32 %v109, %v110
    %v112 = vrot.slane %v111, 2
    %v113 = vadd.f32 %v111, %v112
    %v114 = vrot.slane %v113, 1
    %v115 = vadd.f32 %v113, %v114
    %v116 = vsel %vm59, %v57, 0.0
    %v117 = vadd.f32 %v56, %v116
    %v118 = vrot.slane %v117, 4
    %v119 = vadd.f32 %v117, %v118
    %v120 = vrot.slane %v119, 2
    %v121 = vadd.f32 %v119, %v120
    %v122 = vrot.slane %v121, 1
    %v123 = vadd.f32 %v121, %v122
    %132 = vrot.lane.b32.xlu0 %v67, 120
    %v133 = vpop.permute.xlu0 %132
    %134 = vrot.lane.b32.xlu0 %v75, 120
    %v135 = vpop.permute.xlu0 %134
    %136 = vrot.lane.b32.xlu0 %v83, 120
    %v137 = vpop.permute.xlu0 %136
    %138 = vrot.lane.b32.xlu0 %v91, 120
    %v139 = vpop.permute.xlu0 %138
    %140 = vrot.lane.b32.xlu0 %v99, 120
    %v141 = vpop.permute.xlu0 %140
    %142 = vrot.lane.b32.xlu0 %v107, 120
    %v143 = vpop.permute.xlu0 %142
    %144 = vrot.lane.b32.xlu0 %v115, 120
    %v145 = vpop.permute.xlu0 %144
    %146 = vrot.lane.b32.xlu0 %v123, 120
    %v147 = vpop.permute.xlu0 %146
    %v156 = vadd.f32 %v67, %v133
    %v157 = vadd.f32 %v75, %v135
    %v158 = vadd.f32 %v83, %v137
    %v159 = vadd.f32 %v91, %v139
    %v160 = vadd.f32 %v99, %v141
    %v161 = vadd.f32 %v107, %v143
    %v162 = vadd.f32 %v115, %v145
    %v163 = vadd.f32 %v123, %v147
    %164 = vrot.lane.b32.xlu0 %v67, 112
    %v165 = vpop.permute.xlu0 %164
    %166 = vrot.lane.b32.xlu0 %v75, 112
    %v167 = vpop.permute.xlu0 %166
    %168 = vrot.lane.b32.xlu0 %v83, 112
    %v169 = vpop.permute.xlu0 %168
    %170 = vrot.lane.b32.xlu0 %v91, 112
    %v171 = vpop.permute.xlu0 %170
    %172 = vrot.lane.b32.xlu0 %v99, 112
    %v173 = vpop.permute.xlu0 %172
    %174 = vrot.lane.b32.xlu0 %v107, 112
    %v175 = vpop.permute.xlu0 %174
    %176 = vrot.lane.b32.xlu0 %v115, 112
    %v177 = vpop.permute.xlu0 %176
    %178 = vrot.lane.b32.xlu0 %v123, 112
    %v179 = vpop.permute.xlu0 %178
    %v188 = vadd.f32 %v156, %v165
    %v189 = vadd.f32 %v157, %v167
    %v190 = vadd.f32 %v158, %v169
    %v191 = vadd.f32 %v159, %v171
    %v192 = vadd.f32 %v160, %v173
    %v193 = vadd.f32 %v161, %v175
    %v194 = vadd.f32 %v162, %v177
    %v195 = vadd.f32 %v163, %v179
    %196 = vrot.lane.b32.xlu0 %v67, 104
    %v197 = vpop.permute.xlu0 %196
    %198 = vrot.lane.b32.xlu0 %v75, 104
    %v199 = vpop.permute.xlu0 %198
    %200 = vrot.lane.b32.xlu0 %v83, 104
    %v201 = vpop.permute.xlu0 %200
    %202 = vrot.lane.b32.xlu0 %v91, 104
    %v203 = vpop.permute.xlu0 %202
    %204 = vrot.lane.b32.xlu0 %v99, 104
    %v205 = vpop.permute.xlu0 %204
    %206 = vrot.lane.b32.xlu0 %v107, 104
    %v207 = vpop.permute.xlu0 %206
    %208 = vrot.lane.b32.xlu0 %v115, 104
    %v209 = vpop.permute.xlu0 %208
    %210 = vrot.lane.b32.xlu0 %v123, 104
    %v211 = vpop.permute.xlu0 %210
    %v220 = vadd.f32 %v188, %v197
    %v221 = vadd.f32 %v189, %v199
    %v222 = vadd.f32 %v190, %v201
    %v223 = vadd.f32 %v191, %v203
    %v224 = vadd.f32 %v192, %v205
    %v225 = vadd.f32 %v193, %v207
    %v226 = vadd.f32 %v194, %v209
    %v227 = vadd.f32 %v195, %v211
    %228 = vrot.lane.b32.xlu0 %v67, 96
    %v229 = vpop.permute.xlu0 %228
    %230 = vrot.lane.b32.xlu0 %v75, 96
    %v231 = vpop.permute.xlu0 %230
    %232 = vrot.lane.b32.xlu0 %v83, 96
    %v233 = vpop.permute.xlu0 %232
    %234 = vrot.lane.b32.xlu0 %v91, 96
    %v235 = vpop.permute.xlu0 %234
    %236 = vrot.lane.b32.xlu0 %v99, 96
    %v237 = vpop.permute.xlu0 %236
    %238 = vrot.lane.b32.xlu0 %v107, 96
    %v239 = vpop.permute.xlu0 %238
    %240 = vrot.lane.b32.xlu0 %v115, 96
    %v241 = vpop.permute.xlu0 %240
    %242 = vrot.lane.b32.xlu0 %v123, 96
    %v243 = vpop.permute.xlu0 %242
    %v252 = vadd.f32 %v220, %v229
    %v253 = vadd.f32 %v221, %v231
    %v254 = vadd.f32 %v222, %v233
    %v255 = vadd.f32 %v223, %v235
    %v256 = vadd.f32 %v224, %v237
    %v257 = vadd.f32 %v225, %v239
    %v258 = vadd.f32 %v226, %v241
    %v259 = vadd.f32 %v227, %v243
    %260 = vrot.lane.b32.xlu0 %v67, 88
    %v261 = vpop.permute.xlu0 %260
    %262 = vrot.lane.b32.xlu0 %v75, 88
    %v263 = vpop.permute.xlu0 %262
    %264 = vrot.lane.b32.xlu0 %v83, 88
    %v265 = vpop.permute.xlu0 %264
    %266 = vrot.lane.b32.xlu0 %v91, 88
    %v267 = vpop.permute.xlu0 %266
    %268 = vrot.lane.b32.xlu0 %v99, 88
    %v269 = vpop.permute.xlu0 %268
    %270 = vrot.lane.b32.xlu0 %v107, 88
    %v271 = vpop.permute.xlu0 %270
    %272 = vrot.lane.b32.xlu0 %v115, 88
    %v273 = vpop.permute.xlu0 %272
    %274 = vrot.lane.b32.xlu0 %v123, 88
    %v275 = vpop.permute.xlu0 %274
    %v284 = vadd.f32 %v252, %v261
    %v285 = vadd.f32 %v253, %v263
    %v286 = vadd.f32 %v254, %v265
    %v287 = vadd.f32 %v255, %v267
    %v288 = vadd.f32 %v256, %v269
    %v289 = vadd.f32 %v257, %v271
    %v290 = vadd.f32 %v258, %v273
    %v291 = vadd.f32 %v259, %v275
    %292 = vrot.lane.b32.xlu0 %v67, 80
    %v293 = vpop.permute.xlu0 %292
    %294 = vrot.lane.b32.xlu0 %v75, 80
    %v295 = vpop.permute.xlu0 %294
    %296 = vrot.lane.b32.xlu0 %v83, 80
    %v297 = vpop.permute.xlu0 %296
    %298 = vrot.lane.b32.xlu0 %v91, 80
    %v299 = vpop.permute.xlu0 %298
    %300 = vrot.lane.b32.xlu0 %v99, 80
    %v301 = vpop.permute.xlu0 %300
    %302 = vrot.lane.b32.xlu0 %v107, 80
    %v303 = vpop.permute.xlu0 %302
    %304 = vrot.lane.b32.xlu0 %v115, 80
    %v305 = vpop.permute.xlu0 %304
    %306 = vrot.lane.b32.xlu0 %v123, 80
    %v307 = vpop.permute.xlu0 %306
    %v316 = vadd.f32 %v284, %v293
    %v317 = vadd.f32 %v285, %v295
    %v318 = vadd.f32 %v286, %v297
    %v319 = vadd.f32 %v287, %v299
    %v320 = vadd.f32 %v288, %v301
    %v321 = vadd.f32 %v289, %v303
    %v322 = vadd.f32 %v290, %v305
    %v323 = vadd.f32 %v291, %v307
    %324 = vrot.lane.b32.xlu0 %v67, 72
    %v325 = vpop.permute.xlu0 %324
    %326 = vrot.lane.b32.xlu0 %v75, 72
    %v327 = vpop.permute.xlu0 %326
    %328 = vrot.lane.b32.xlu0 %v83, 72
    %v329 = vpop.permute.xlu0 %328
    %330 = vrot.lane.b32.xlu0 %v91, 72
    %v331 = vpop.permute.xlu0 %330
    %332 = vrot.lane.b32.xlu0 %v99, 72
    %v333 = vpop.permute.xlu0 %332
    %334 = vrot.lane.b32.xlu0 %v107, 72
    %v335 = vpop.permute.xlu0 %334
    %336 = vrot.lane.b32.xlu0 %v115, 72
    %v337 = vpop.permute.xlu0 %336
    %338 = vrot.lane.b32.xlu0 %v123, 72
    %v339 = vpop.permute.xlu0 %338
    %v348 = vadd.f32 %v316, %v325
    %v349 = vadd.f32 %v317, %v327
    %v350 = vadd.f32 %v318, %v329
    %v351 = vadd.f32 %v319, %v331
    %v352 = vadd.f32 %v320, %v333
    %v353 = vadd.f32 %v321, %v335
    %v354 = vadd.f32 %v322, %v337
    %v355 = vadd.f32 %v323, %v339
    %356 = vrot.lane.b32.xlu0 %v67, 64
    %v357 = vpop.permute.xlu0 %356
    %358 = vrot.lane.b32.xlu0 %v75, 64
    %v359 = vpop.permute.xlu0 %358
    %360 = vrot.lane.b32.xlu0 %v83, 64
    %v361 = vpop.permute.xlu0 %360
    %362 = vrot.lane.b32.xlu0 %v91, 64
    %v363 = vpop.permute.xlu0 %362
    %364 = vrot.lane.b32.xlu0 %v99, 64
    %v365 = vpop.permute.xlu0 %364
    %366 = vrot.lane.b32.xlu0 %v107, 64
    %v367 = vpop.permute.xlu0 %366
    %368 = vrot.lane.b32.xlu0 %v115, 64
    %v369 = vpop.permute.xlu0 %368
    %370 = vrot.lane.b32.xlu0 %v123, 64
    %v371 = vpop.permute.xlu0 %370
    %v380 = vadd.f32 %v348, %v357
    %v381 = vadd.f32 %v349, %v359
    %v382 = vadd.f32 %v350, %v361
    %v383 = vadd.f32 %v351, %v363
    %v384 = vadd.f32 %v352, %v365
    %v385 = vadd.f32 %v353, %v367
    %v386 = vadd.f32 %v354, %v369
    %v387 = vadd.f32 %v355, %v371
    %388 = vrot.lane.b32.xlu0 %v67, 56
    %v389 = vpop.permute.xlu0 %388
    %390 = vrot.lane.b32.xlu0 %v75, 56
    %v391 = vpop.permute.xlu0 %390
    %392 = vrot.lane.b32.xlu0 %v83, 56
    %v393 = vpop.permute.xlu0 %392
    %394 = vrot.lane.b32.xlu0 %v91, 56
    %v395 = vpop.permute.xlu0 %394
    %396 = vrot.lane.b32.xlu0 %v99, 56
    %v397 = vpop.permute.xlu0 %396
    %398 = vrot.lane.b32.xlu0 %v107, 56
    %v399 = vpop.permute.xlu0 %398
    %400 = vrot.lane.b32.xlu0 %v115, 56
    %v401 = vpop.permute.xlu0 %400
    %402 = vrot.lane.b32.xlu0 %v123, 56
    %v403 = vpop.permute.xlu0 %402
    %v412 = vadd.f32 %v380, %v389
    %v413 = vadd.f32 %v381, %v391
    %v414 = vadd.f32 %v382, %v393
    %v415 = vadd.f32 %v383, %v395
    %v416 = vadd.f32 %v384, %v397
    %v417 = vadd.f32 %v385, %v399
    %v418 = vadd.f32 %v386, %v401
    %v419 = vadd.f32 %v387, %v403
    %420 = vrot.lane.b32.xlu0 %v67, 48
    %v421 = vpop.permute.xlu0 %420
    %422 = vrot.lane.b32.xlu0 %v75, 48
    %v423 = vpop.permute.xlu0 %422
    %424 = vrot.lane.b32.xlu0 %v83, 48
    %v425 = vpop.permute.xlu0 %424
    %426 = vrot.lane.b32.xlu0 %v91, 48
    %v427 = vpop.permute.xlu0 %426
    %428 = vrot.lane.b32.xlu0 %v99, 48
    %v429 = vpop.permute.xlu0 %428
    %430 = vrot.lane.b32.xlu0 %v107, 48
    %v431 = vpop.permute.xlu0 %430
    %432 = vrot.lane.b32.xlu0 %v115, 48
    %v433 = vpop.permute.xlu0 %432
    %434 = vrot.lane.b32.xlu0 %v123, 48
    %v435 = vpop.permute.xlu0 %434
    %v444 = vadd.f32 %v412, %v421
    %v445 = vadd.f32 %v413, %v423
    %v446 = vadd.f32 %v414, %v425
    %v447 = vadd.f32 %v415, %v427
    %v448 = vadd.f32 %v416, %v429
    %v449 = vadd.f32 %v417, %v431
    %v450 = vadd.f32 %v418, %v433
    %v451 = vadd.f32 %v419, %v435
    %452 = vrot.lane.b32.xlu0 %v67, 40
    %v453 = vpop.permute.xlu0 %452
    %454 = vrot.lane.b32.xlu0 %v75, 40
    %v455 = vpop.permute.xlu0 %454
    %456 = vrot.lane.b32.xlu0 %v83, 40
    %v457 = vpop.permute.xlu0 %456
    %458 = vrot.lane.b32.xlu0 %v91, 40
    %v459 = vpop.permute.xlu0 %458
    %460 = vrot.lane.b32.xlu0 %v99, 40
    %v461 = vpop.permute.xlu0 %460
    %462 = vrot.lane.b32.xlu0 %v107, 40
    %v463 = vpop.permute.xlu0 %462
    %464 = vrot.lane.b32.xlu0 %v115, 40
    %v465 = vpop.permute.xlu0 %464
    %466 = vrot.lane.b32.xlu0 %v123, 40
    %v467 = vpop.permute.xlu0 %466
    %v476 = vadd.f32 %v444, %v453
    %v477 = vadd.f32 %v445, %v455
    %v478 = vadd.f32 %v446, %v457
    %v479 = vadd.f32 %v447, %v459
    %v480 = vadd.f32 %v448, %v461
    %v481 = vadd.f32 %v449, %v463
    %v482 = vadd.f32 %v450, %v465
    %v483 = vadd.f32 %v451, %v467
    %484 = vrot.lane.b32.xlu0 %v67, 32
    %v485 = vpop.permute.xlu0 %484
    %486 = vrot.lane.b32.xlu0 %v75, 32
    %v487 = vpop.permute.xlu0 %486
    %488 = vrot.lane.b32.xlu0 %v83, 32
    %v489 = vpop.permute.xlu0 %488
    %490 = vrot.lane.b32.xlu0 %v91, 32
    %v491 = vpop.permute.xlu0 %490
    %492 = vrot.lane.b32.xlu0 %v99, 32
    %v493 = vpop.permute.xlu0 %492
    %494 = vrot.lane.b32.xlu0 %v107, 32
    %v495 = vpop.permute.xlu0 %494
    %496 = vrot.lane.b32.xlu0 %v115, 32
    %v497 = vpop.permute.xlu0 %496
    %498 = vrot.lane.b32.xlu0 %v123, 32
    %v499 = vpop.permute.xlu0 %498
    %v508 = vadd.f32 %v476, %v485
    %v509 = vadd.f32 %v477, %v487
    %v510 = vadd.f32 %v478, %v489
    %v511 = vadd.f32 %v479, %v491
    %v512 = vadd.f32 %v480, %v493
    %v513 = vadd.f32 %v481, %v495
    %v514 = vadd.f32 %v482, %v497
    %v515 = vadd.f32 %v483, %v499
    %516 = vrot.lane.b32.xlu0 %v67, 24
    %v517 = vpop.permute.xlu0 %516
    %518 = vrot.lane.b32.xlu0 %v75, 24
    %v519 = vpop.permute.xlu0 %518
    %520 = vrot.lane.b32.xlu0 %v83, 24
    %v521 = vpop.permute.xlu0 %520
    %522 = vrot.lane.b32.xlu0 %v91, 24
    %v523 = vpop.permute.xlu0 %522
    %524 = vrot.lane.b32.xlu0 %v99, 24
    %v525 = vpop.permute.xlu0 %524
    %526 = vrot.lane.b32.xlu0 %v107, 24
    %v527 = vpop.permute.xlu0 %526
    %528 = vrot.lane.b32.xlu0 %v115, 24
    %v529 = vpop.permute.xlu0 %528
    %530 = vrot.lane.b32.xlu0 %v123, 24
    %v531 = vpop.permute.xlu0 %530
    %v540 = vadd.f32 %v508, %v517
    %v541 = vadd.f32 %v509, %v519
    %v542 = vadd.f32 %v510, %v521
    %v543 = vadd.f32 %v511, %v523
    %v544 = vadd.f32 %v512, %v525
    %v545 = vadd.f32 %v513, %v527
    %v546 = vadd.f32 %v514, %v529
    %v547 = vadd.f32 %v515, %v531
    %v549 = vrot.slane %v58, 1
    %v550 = vrot.slane %v58, 2
    %v551 = vrot.slane %v58, 3
    %v552 = vrot.slane %v58, 4
    %v553 = vrot.slane %v58, 5
    %v554 = vrot.slane %v58, 6
    %v555 = vrot.slane %v58, 7
    %v564 = vmul.f32 %v540, %v58
    %v565 = vmul.f32 %v541, %v549
    %v566 = vmul.f32 %v542, %v550
    %v567 = vmul.f32 %v543, %v551
    %v568 = vmul.f32 %v544, %v552
    %v569 = vmul.f32 %v545, %v553
    %v570 = vmul.f32 %v546, %v554
    %v571 = vmul.f32 %v547, %v555
    %vm588 = vcmask 1046528
    %v589 = vrot.slane %v42, 1
    %v590 = vrot.slane %v43, 1
    %v591 = vsel %vm588, %v589, %v590
    %v592 = vrot.slane %v44, 1
    %v593 = vrot.slane %v45, 1
    %v594 = vsel %vm588, %v592, %v593
    %v595 = vrot.slane %v46, 1
    %v596 = vrot.slane %v47, 1
    %v597 = vsel %vm588, %v595, %v596
    %v598 = vrot.slane %v48, 1
    %v599 = vrot.slane %v49, 1
    %v600 = vsel %vm588, %v598, %v599
    %v601 = vrot.slane %v50, 1
    %v602 = vrot.slane %v51, 1
    %v603 = vsel %vm588, %v601, %v602
    %v604 = vrot.slane %v52, 1
    %v605 = vrot.slane %v53, 1
    %v606 = vsel %vm588, %v604, %v605
    %v607 = vrot.slane %v54, 1
    %v608 = vrot.slane %v55, 1
    %v609 = vsel %vm588, %v607, %v608
    %v610 = vrot.slane %v56, 1
    %v611 = vrot.slane %v57, 1
    %v612 = vsel %vm588, %v610, %v611
    %v629 = vsel %vm59, %v590, 0.0
    %v630 = vadd.f32 %v591, %v629
    %v631 = vrot.slane %v630, 4
    %v632 = vadd.f32 %v630, %v631
    %v633 = vrot.slane %v632, 2
    %v634 = vadd.f32 %v632, %v633
    %v635 = vrot.slane %v634, 1
    %v636 = vadd.f32 %v634, %v635
    %v637 = vsel %vm59, %v593, 0.0
    %v638 = vadd.f32 %v594, %v637
    %v639 = vrot.slane %v638, 4
    %v640 = vadd.f32 %v638, %v639
    %v641 = vrot.slane %v640, 2
    %v642 = vadd.f32 %v640, %v641
    %v643 = vrot.slane %v642, 1
    %v644 = vadd.f32 %v642, %v643
    %v645 = vsel %vm59, %v596, 0.0
    %v646 = vadd.f32 %v597, %v645
    %v647 = vrot.slane %v646, 4
    %v648 = vadd.f32 %v646, %v647
    %v649 = vrot.slane %v648, 2
    %v650 = vadd.f32 %v648, %v649
    %v651 = vrot.slane %v650, 1
    %v652 = vadd.f32 %v650, %v651
    %v653 = vsel %vm59, %v599, 0.0
    %v654 = vadd.f32 %v600, %v653
    %v655 = vrot.slane %v654, 4
    %v656 = vadd.f32 %v654, %v655
    %v657 = vrot.slane %v656, 2
    %v658 = vadd.f32 %v656, %v657
    %v659 = vrot.slane %v658, 1
    %v660 = vadd.f32 %v658, %v659
    %v661 = vsel %vm59, %v602, 0.0
    %v662 = vadd.f32 %v603, %v661
    %v663 = vrot.slane %v662, 4
    %v664 = vadd.f32 %v662, %v663
    %v665 = vrot.slane %v664, 2
    %v666 = vadd.f32 %v664, %v665
    %v667 = vrot.slane %v666, 1
    %v668 = vadd.f32 %v666, %v667
    %v669 = vsel %vm59, %v605, 0.0
    %v670 = vadd.f32 %v606, %v669
    %v671 = vrot.slane %v670, 4
    %v672 = vadd.f32 %v670, %v671
    %v673 = vrot.slane %v672, 2
    %v674 = vadd.f32 %v672, %v673
    %v675 = vrot.slane %v674, 1
    %v676 = vadd.f32 %v674, %v675
    %v677 = vsel %vm59, %v608, 0.0
    %v678 = vadd.f32 %v609, %v677
    %v679 = vrot.slane %v678, 4
    %v680 = vadd.f32 %v678, %v679
    %v681 = vrot.slane %v680, 2
    %v682 = vadd.f32 %v680, %v681
    %v683 = vrot.slane %v682, 1
    %v684 = vadd.f32 %v682, %v683
    %v685 = vsel %vm59, %v611, 0.0
    %v686 = vadd.f32 %v612, %v685
    %v687 = vrot.slane %v686, 4
    %v688 = vadd.f32 %v686, %v687
    %v689 = vrot.slane %v688, 2
    %v690 = vadd.f32 %v688, %v689
    %v691 = vrot.slane %v690, 1
    %v692 = vadd.f32 %v690, %v691
    %701 = vrot.lane.b32.xlu0 %v636, 120
    %v702 = vpop.permute.xlu0 %701
    %703 = vrot.lane.b32.xlu0 %v644, 120
    %v704 = vpop.permute.xlu0 %703
    %705 = vrot.lane.b32.xlu0 %v652, 120
    %v706 = vpop.permute.xlu0 %705
    %707 = vrot.lane.b32.xlu0 %v660, 120
    %v708 = vpop.permute.xlu0 %707
    %709 = vrot.lane.b32.xlu0 %v668, 120
    %v710 = vpop.permute.xlu0 %709
    %711 = vrot.lane.b32.xlu0 %v676, 120
    %v712 = vpop.permute.xlu0 %711
    %713 = vrot.lane.b32.xlu0 %v684, 120
    %v714 = vpop.permute.xlu0 %713
    %715 = vrot.lane.b32.xlu0 %v692, 120
    %v716 = vpop.permute.xlu0 %715
    %v725 = vadd.f32 %v636, %v702
    %v726 = vadd.f32 %v644, %v704
    %v727 = vadd.f32 %v652, %v706
    %v728 = vadd.f32 %v660, %v708
    %v729 = vadd.f32 %v668, %v710
    %v730 = vadd.f32 %v676, %v712
    %v731 = vadd.f32 %v684, %v714
    %v732 = vadd.f32 %v692, %v716
    %733 = vrot.lane.b32.xlu0 %v636, 112
    %v734 = vpop.permute.xlu0 %733
    %735 = vrot.lane.b32.xlu0 %v644, 112
    %v736 = vpop.permute.xlu0 %735
    %737 = vrot.lane.b32.xlu0 %v652, 112
    %v738 = vpop.permute.xlu0 %737
    %739 = vrot.lane.b32.xlu0 %v660, 112
    %v740 = vpop.permute.xlu0 %739
    %741 = vrot.lane.b32.xlu0 %v668, 112
    %v742 = vpop.permute.xlu0 %741
    %743 = vrot.lane.b32.xlu0 %v676, 112
    %v744 = vpop.permute.xlu0 %743
    %745 = vrot.lane.b32.xlu0 %v684, 112
    %v746 = vpop.permute.xlu0 %745
    %747 = vrot.lane.b32.xlu0 %v692, 112
    %v748 = vpop.permute.xlu0 %747
    %v757 = vadd.f32 %v725, %v734
    %v758 = vadd.f32 %v726, %v736
    %v759 = vadd.f32 %v727, %v738
    %v760 = vadd.f32 %v728, %v740
    %v761 = vadd.f32 %v729, %v742
    %v762 = vadd.f32 %v730, %v744
    %v763 = vadd.f32 %v731, %v746
    %v764 = vadd.f32 %v732, %v748
    %765 = vrot.lane.b32.xlu0 %v636, 104
    %v766 = vpop.permute.xlu0 %765
    %767 = vrot.lane.b32.xlu0 %v644, 104
    %v768 = vpop.permute.xlu0 %767
    %769 = vrot.lane.b32.xlu0 %v652, 104
    %v770 = vpop.permute.xlu0 %769
    %771 = vrot.lane.b32.xlu0 %v660, 104
    %v772 = vpop.permute.xlu0 %771
    %773 = vrot.lane.b32.xlu0 %v668, 104
    %v774 = vpop.permute.xlu0 %773
    %775 = vrot.lane.b32.xlu0 %v676, 104
    %v776 = vpop.permute.xlu0 %775
    %777 = vrot.lane.b32.xlu0 %v684, 104
    %v778 = vpop.permute.xlu0 %777
    %779 = vrot.lane.b32.xlu0 %v692, 104
    %v780 = vpop.permute.xlu0 %779
    %v789 = vadd.f32 %v757, %v766
    %v790 = vadd.f32 %v758, %v768
    %v791 = vadd.f32 %v759, %v770
    %v792 = vadd.f32 %v760, %v772
    %v793 = vadd.f32 %v761, %v774
    %v794 = vadd.f32 %v762, %v776
    %v795 = vadd.f32 %v763, %v778
    %v796 = vadd.f32 %v764, %v780
    %797 = vrot.lane.b32.xlu0 %v636, 96
    %v798 = vpop.permute.xlu0 %797
    %799 = vrot.lane.b32.xlu0 %v644, 96
    %v800 = vpop.permute.xlu0 %799
    %801 = vrot.lane.b32.xlu0 %v652, 96
    %v802 = vpop.permute.xlu0 %801
    %803 = vrot.lane.b32.xlu0 %v660, 96
    %v804 = vpop.permute.xlu0 %803
    %805 = vrot.lane.b32.xlu0 %v668, 96
    %v806 = vpop.permute.xlu0 %805
    %807 = vrot.lane.b32.xlu0 %v676, 96
    %v808 = vpop.permute.xlu0 %807
    %809 = vrot.lane.b32.xlu0 %v684, 96
    %v810 = vpop.permute.xlu0 %809
    %811 = vrot.lane.b32.xlu0 %v692, 96
    %v812 = vpop.permute.xlu0 %811
    %v821 = vadd.f32 %v789, %v798
    %v822 = vadd.f32 %v790, %v800
    %v823 = vadd.f32 %v791, %v802
    %v824 = vadd.f32 %v792, %v804
    %v825 = vadd.f32 %v793, %v806
    %v826 = vadd.f32 %v794, %v808
    %v827 = vadd.f32 %v795, %v810
    %v828 = vadd.f32 %v796, %v812
    %829 = vrot.lane.b32.xlu0 %v636, 88
    %v830 = vpop.permute.xlu0 %829
    %831 = vrot.lane.b32.xlu0 %v644, 88
    %v832 = vpop.permute.xlu0 %831
    %833 = vrot.lane.b32.xlu0 %v652, 88
    %v834 = vpop.permute.xlu0 %833
    %835 = vrot.lane.b32.xlu0 %v660, 88
    %v836 = vpop.permute.xlu0 %835
    %837 = vrot.lane.b32.xlu0 %v668, 88
    %v838 = vpop.permute.xlu0 %837
    %839 = vrot.lane.b32.xlu0 %v676, 88
    %v840 = vpop.permute.xlu0 %839
    %841 = vrot.lane.b32.xlu0 %v684, 88
    %v842 = vpop.permute.xlu0 %841
    %843 = vrot.lane.b32.xlu0 %v692, 88
    %v844 = vpop.permute.xlu0 %843
    %v853 = vadd.f32 %v821, %v830
    %v854 = vadd.f32 %v822, %v832
    %v855 = vadd.f32 %v823, %v834
    %v856 = vadd.f32 %v824, %v836
    %v857 = vadd.f32 %v825, %v838
    %v858 = vadd.f32 %v826, %v840
    %v859 = vadd.f32 %v827, %v842
    %v860 = vadd.f32 %v828, %v844
    %861 = vrot.lane.b32.xlu0 %v636, 80
    %v862 = vpop.permute.xlu0 %861
    %863 = vrot.lane.b32.xlu0 %v644, 80
    %v864 = vpop.permute.xlu0 %863
    %865 = vrot.lane.b32.xlu0 %v652, 80
    %v866 = vpop.permute.xlu0 %865
    %867 = vrot.lane.b32.xlu0 %v660, 80
    %v868 = vpop.permute.xlu0 %867
    %869 = vrot.lane.b32.xlu0 %v668, 80
    %v870 = vpop.permute.xlu0 %869
    %871 = vrot.lane.b32.xlu0 %v676, 80
    %v872 = vpop.permute.xlu0 %871
    %873 = vrot.lane.b32.xlu0 %v684, 80
    %v874 = vpop.permute.xlu0 %873
    %875 = vrot.lane.b32.xlu0 %v692, 80
    %v876 = vpop.permute.xlu0 %875
    %v885 = vadd.f32 %v853, %v862
    %v886 = vadd.f32 %v854, %v864
    %v887 = vadd.f32 %v855, %v866
    %v888 = vadd.f32 %v856, %v868
    %v889 = vadd.f32 %v857, %v870
    %v890 = vadd.f32 %v858, %v872
    %v891 = vadd.f32 %v859, %v874
    %v892 = vadd.f32 %v860, %v876
    %893 = vrot.lane.b32.xlu0 %v636, 72
    %v894 = vpop.permute.xlu0 %893
    %895 = vrot.lane.b32.xlu0 %v644, 72
    %v896 = vpop.permute.xlu0 %895
    %897 = vrot.lane.b32.xlu0 %v652, 72
    %v898 = vpop.permute.xlu0 %897
    %899 = vrot.lane.b32.xlu0 %v660, 72
    %v900 = vpop.permute.xlu0 %899
    %901 = vrot.lane.b32.xlu0 %v668, 72
    %v902 = vpop.permute.xlu0 %901
    %903 = vrot.lane.b32.xlu0 %v676, 72
    %v904 = vpop.permute.xlu0 %903
    %905 = vrot.lane.b32.xlu0 %v684, 72
    %v906 = vpop.permute.xlu0 %905
    %907 = vrot.lane.b32.xlu0 %v692, 72
    %v908 = vpop.permute.xlu0 %907
    %v917 = vadd.f32 %v885, %v894
    %v918 = vadd.f32 %v886, %v896
    %v919 = vadd.f32 %v887, %v898
    %v920 = vadd.f32 %v888, %v900
    %v921 = vadd.f32 %v889, %v902
    %v922 = vadd.f32 %v890, %v904
    %v923 = vadd.f32 %v891, %v906
    %v924 = vadd.f32 %v892, %v908
    %925 = vrot.lane.b32.xlu0 %v636, 64
    %v926 = vpop.permute.xlu0 %925
    %927 = vrot.lane.b32.xlu0 %v644, 64
    %v928 = vpop.permute.xlu0 %927
    %929 = vrot.lane.b32.xlu0 %v652, 64
    %v930 = vpop.permute.xlu0 %929
    %931 = vrot.lane.b32.xlu0 %v660, 64
    %v932 = vpop.permute.xlu0 %931
    %933 = vrot.lane.b32.xlu0 %v668, 64
    %v934 = vpop.permute.xlu0 %933
    %935 = vrot.lane.b32.xlu0 %v676, 64
    %v936 = vpop.permute.xlu0 %935
    %937 = vrot.lane.b32.xlu0 %v684, 64
    %v938 = vpop.permute.xlu0 %937
    %939 = vrot.lane.b32.xlu0 %v692, 64
    %v940 = vpop.permute.xlu0 %939
    %v949 = vadd.f32 %v917, %v926
    %v950 = vadd.f32 %v918, %v928
    %v951 = vadd.f32 %v919, %v930
    %v952 = vadd.f32 %v920, %v932
    %v953 = vadd.f32 %v921, %v934
    %v954 = vadd.f32 %v922, %v936
    %v955 = vadd.f32 %v923, %v938
    %v956 = vadd.f32 %v924, %v940
    %957 = vrot.lane.b32.xlu0 %v636, 56
    %v958 = vpop.permute.xlu0 %957
    %959 = vrot.lane.b32.xlu0 %v644, 56
    %v960 = vpop.permute.xlu0 %959
    %961 = vrot.lane.b32.xlu0 %v652, 56
    %v962 = vpop.permute.xlu0 %961
    %963 = vrot.lane.b32.xlu0 %v660, 56
    %v964 = vpop.permute.xlu0 %963
    %965 = vrot.lane.b32.xlu0 %v668, 56
    %v966 = vpop.permute.xlu0 %965
    %967 = vrot.lane.b32.xlu0 %v676, 56
    %v968 = vpop.permute.xlu0 %967
    %969 = vrot.lane.b32.xlu0 %v684, 56
    %v970 = vpop.permute.xlu0 %969
    %971 = vrot.lane.b32.xlu0 %v692, 56
    %v972 = vpop.permute.xlu0 %971
    %v981 = vadd.f32 %v949, %v958
    %v982 = vadd.f32 %v950, %v960
    %v983 = vadd.f32 %v951, %v962
    %v984 = vadd.f32 %v952, %v964
    %v985 = vadd.f32 %v953, %v966
    %v986 = vadd.f32 %v954, %v968
    %v987 = vadd.f32 %v955, %v970
    %v988 = vadd.f32 %v956, %v972
    %989 = vrot.lane.b32.xlu0 %v636, 48
    %v990 = vpop.permute.xlu0 %989
    %991 = vrot.lane.b32.xlu0 %v644, 48
    %v992 = vpop.permute.xlu0 %991
    %993 = vrot.lane.b32.xlu0 %v652, 48
    %v994 = vpop.permute.xlu0 %993
    %995 = vrot.lane.b32.xlu0 %v660, 48
    %v996 = vpop.permute.xlu0 %995
    %997 = vrot.lane.b32.xlu0 %v668, 48
    %v998 = vpop.permute.xlu0 %997
    %999 = vrot.lane.b32.xlu0 %v676, 48
    %v1000 = vpop.permute.xlu0 %999
    %1001 = vrot.lane.b32.xlu0 %v684, 48
    %v1002 = vpop.permute.xlu0 %1001
    %1003 = vrot.lane.b32.xlu0 %v692, 48
    %v1004 = vpop.permute.xlu0 %1003
    %v1013 = vadd.f32 %v981, %v990
    %v1014 = vadd.f32 %v982, %v992
    %v1015 = vadd.f32 %v983, %v994
    %v1016 = vadd.f32 %v984, %v996
    %v1017 = vadd.f32 %v985, %v998
    %v1018 = vadd.f32 %v986, %v1000
    %v1019 = vadd.f32 %v987, %v1002
    %v1020 = vadd.f32 %v988, %v1004
    %1021 = vrot.lane.b32.xlu0 %v636, 40
    %v1022 = vpop.permute.xlu0 %1021
    %1023 = vrot.lane.b32.xlu0 %v644, 40
    %v1024 = vpop.permute.xlu0 %1023
    %1025 = vrot.lane.b32.xlu0 %v652, 40
    %v1026 = vpop.permute.xlu0 %1025
    %1027 = vrot.lane.b32.xlu0 %v660, 40
    %v1028 = vpop.permute.xlu0 %1027
    %1029 = vrot.lane.b32.xlu0 %v668, 40
    %v1030 = vpop.permute.xlu0 %1029
    %1031 = vrot.lane.b32.xlu0 %v676, 40
    %v1032 = vpop.permute.xlu0 %1031
    %1033 = vrot.lane.b32.xlu0 %v684, 40
    %v1034 = vpop.permute.xlu0 %1033
    %1035 = vrot.lane.b32.xlu0 %v692, 40
    %v1036 = vpop.permute.xlu0 %1035
    %v1045 = vadd.f32 %v1013, %v1022
    %v1046 = vadd.f32 %v1014, %v1024
    %v1047 = vadd.f32 %v1015, %v1026
    %v1048 = vadd.f32 %v1016, %v1028
    %v1049 = vadd.f32 %v1017, %v1030
    %v1050 = vadd.f32 %v1018, %v1032
    %v1051 = vadd.f32 %v1019, %v1034
    %v1052 = vadd.f32 %v1020, %v1036
    %1053 = vrot.lane.b32.xlu0 %v636, 32
    %v1054 = vpop.permute.xlu0 %1053
    %1055 = vrot.lane.b32.xlu0 %v644, 32
    %v1056 = vpop.permute.xlu0 %1055
    %1057 = vrot.lane.b32.xlu0 %v652, 32
    %v1058 = vpop.permute.xlu0 %1057
    %1059 = vrot.lane.b32.xlu0 %v660, 32
    %v1060 = vpop.permute.xlu0 %1059
    %1061 = vrot.lane.b32.xlu0 %v668, 32
    %v1062 = vpop.permute.xlu0 %1061
    %1063 = vrot.lane.b32.xlu0 %v676, 32
    %v1064 = vpop.permute.xlu0 %1063
    %1065 = vrot.lane.b32.xlu0 %v684, 32
    %v1066 = vpop.permute.xlu0 %1065
    %1067 = vrot.lane.b32.xlu0 %v692, 32
    %v1068 = vpop.permute.xlu0 %1067
    %v1077 = vadd.f32 %v1045, %v1054
    %v1078 = vadd.f32 %v1046, %v1056
    %v1079 = vadd.f32 %v1047, %v1058
    %v1080 = vadd.f32 %v1048, %v1060
    %v1081 = vadd.f32 %v1049, %v1062
    %v1082 = vadd.f32 %v1050, %v1064
    %v1083 = vadd.f32 %v1051, %v1066
    %v1084 = vadd.f32 %v1052, %v1068
    %1085 = vrot.lane.b32.xlu0 %v636, 24
    %v1086 = vpop.permute.xlu0 %1085
    %1087 = vrot.lane.b32.xlu0 %v644, 24
    %v1088 = vpop.permute.xlu0 %1087
    %1089 = vrot.lane.b32.xlu0 %v652, 24
    %v1090 = vpop.permute.xlu0 %1089
    %1091 = vrot.lane.b32.xlu0 %v660, 24
    %v1092 = vpop.permute.xlu0 %1091
    %1093 = vrot.lane.b32.xlu0 %v668, 24
    %v1094 = vpop.permute.xlu0 %1093
    %1095 = vrot.lane.b32.xlu0 %v676, 24
    %v1096 = vpop.permute.xlu0 %1095
    %1097 = vrot.lane.b32.xlu0 %v684, 24
    %v1098 = vpop.permute.xlu0 %1097
    %1099 = vrot.lane.b32.xlu0 %v692, 24
    %v1100 = vpop.permute.xlu0 %1099
    %v1109 = vadd.f32 %v1077, %v1086
    %v1110 = vadd.f32 %v1078, %v1088
    %v1111 = vadd.f32 %v1079, %v1090
    %v1112 = vadd.f32 %v1080, %v1092
    %v1113 = vadd.f32 %v1081, %v1094
    %v1114 = vadd.f32 %v1082, %v1096
    %v1115 = vadd.f32 %v1083, %v1098
    %v1116 = vadd.f32 %v1084, %v1100
    %v1117 = vmul.f32 %v1109, %v58
    %v1118 = vmul.f32 %v1110, %v549
    %v1119 = vmul.f32 %v1111, %v550
    %v1120 = vmul.f32 %v1112, %v551
    %v1121 = vmul.f32 %v1113, %v552
    %v1122 = vmul.f32 %v1114, %v553
    %v1123 = vmul.f32 %v1115, %v554
    %v1124 = vmul.f32 %v1116, %v555
    %v1125 = vrot.slane %v42, 2
    %v1126 = vrot.slane %v43, 2
    %v1127 = vsel %vm59, %v1125, %v1126
    %v1128 = vrot.slane %v44, 2
    %v1129 = vrot.slane %v45, 2
    %v1130 = vsel %vm59, %v1128, %v1129
    %v1131 = vrot.slane %v46, 2
    %v1132 = vrot.slane %v47, 2
    %v1133 = vsel %vm59, %v1131, %v1132
    %v1134 = vrot.slane %v48, 2
    %v1135 = vrot.slane %v49, 2
    %v1136 = vsel %vm59, %v1134, %v1135
    %v1137 = vrot.slane %v50, 2
    %v1138 = vrot.slane %v51, 2
    %v1139 = vsel %vm59, %v1137, %v1138
    %v1140 = vrot.slane %v52, 2
    %v1141 = vrot.slane %v53, 2
    %v1142 = vsel %vm59, %v1140, %v1141
    %v1143 = vrot.slane %v54, 2
    %v1144 = vrot.slane %v55, 2
    %v1145 = vsel %vm59, %v1143, %v1144
    %v1146 = vrot.slane %v56, 2
    %v1147 = vrot.slane %v57, 2
    %v1148 = vsel %vm59, %v1146, %v1147
    %v1165 = vsel %vm59, %v1126, 0.0
    %v1166 = vadd.f32 %v1127, %v1165
    %v1167 = vrot.slane %v1166, 4
    %v1168 = vadd.f32 %v1166, %v1167
    %v1169 = vrot.slane %v1168, 2
    %v1170 = vadd.f32 %v1168, %v1169
    %v1171 = vrot.slane %v1170, 1
    %v1172 = vadd.f32 %v1170, %v1171
    %v1173 = vsel %vm59, %v1129, 0.0
    %v1174 = vadd.f32 %v1130, %v1173
    %v1175 = vrot.slane %v1174, 4
    %v1176 = vadd.f32 %v1174, %v1175
    %v1177 = vrot.slane %v1176, 2
    %v1178 = vadd.f32 %v1176, %v1177
    %v1179 = vrot.slane %v1178, 1
    %v1180 = vadd.f32 %v1178, %v1179
    %v1181 = vsel %vm59, %v1132, 0.0
    %v1182 = vadd.f32 %v1133, %v1181
    %v1183 = vrot.slane %v1182, 4
    %v1184 = vadd.f32 %v1182, %v1183
    %v1185 = vrot.slane %v1184, 2
    %v1186 = vadd.f32 %v1184, %v1185
    %v1187 = vrot.slane %v1186, 1
    %v1188 = vadd.f32 %v1186, %v1187
    %v1189 = vsel %vm59, %v1135, 0.0
    %v1190 = vadd.f32 %v1136, %v1189
    %v1191 = vrot.slane %v1190, 4
    %v1192 = vadd.f32 %v1190, %v1191
    %v1193 = vrot.slane %v1192, 2
    %v1194 = vadd.f32 %v1192, %v1193
    %v1195 = vrot.slane %v1194, 1
    %v1196 = vadd.f32 %v1194, %v1195
    %v1197 = vsel %vm59, %v1138, 0.0
    %v1198 = vadd.f32 %v1139, %v1197
    %v1199 = vrot.slane %v1198, 4
    %v1200 = vadd.f32 %v1198, %v1199
    %v1201 = vrot.slane %v1200, 2
    %v1202 = vadd.f32 %v1200, %v1201
    %v1203 = vrot.slane %v1202, 1
    %v1204 = vadd.f32 %v1202, %v1203
    %v1205 = vsel %vm59, %v1141, 0.0
    %v1206 = vadd.f32 %v1142, %v1205
    %v1207 = vrot.slane %v1206, 4
    %v1208 = vadd.f32 %v1206, %v1207
    %v1209 = vrot.slane %v1208, 2
    %v1210 = vadd.f32 %v1208, %v1209
    %v1211 = vrot.slane %v1210, 1
    %v1212 = vadd.f32 %v1210, %v1211
    %v1213 = vsel %vm59, %v1144, 0.0
    %v1214 = vadd.f32 %v1145, %v1213
    %v1215 = vrot.slane %v1214, 4
    %v1216 = vadd.f32 %v1214, %v1215
    %v1217 = vrot.slane %v1216, 2
    %v1218 = vadd.f32 %v1216, %v1217
    %v1219 = vrot.slane %v1218, 1
    %v1220 = vadd.f32 %v1218, %v1219
    %v1221 = vsel %vm59, %v1147, 0.0
    %v1222 = vadd.f32 %v1148, %v1221
    %v1223 = vrot.slane %v1222, 4
    %v1224 = vadd.f32 %v1222, %v1223
    %v1225 = vrot.slane %v1224, 2
    %v1226 = vadd.f32 %v1224, %v1225
    %v1227 = vrot.slane %v1226, 1
    %v1228 = vadd.f32 %v1226, %v1227
    %1237 = vrot.lane.b32.xlu0 %v1172, 120
    %v1238 = vpop.permute.xlu0 %1237
    %1239 = vrot.lane.b32.xlu0 %v1180, 120
    %v1240 = vpop.permute.xlu0 %1239
    %1241 = vrot.lane.b32.xlu0 %v1188, 120
    %v1242 = vpop.permute.xlu0 %1241
    %1243 = vrot.lane.b32.xlu0 %v1196, 120
    %v1244 = vpop.permute.xlu0 %1243
    %1245 = vrot.lane.b32.xlu0 %v1204, 120
    %v1246 = vpop.permute.xlu0 %1245
    %1247 = vrot.lane.b32.xlu0 %v1212, 120
    %v1248 = vpop.permute.xlu0 %1247
    %1249 = vrot.lane.b32.xlu0 %v1220, 120
    %v1250 = vpop.permute.xlu0 %1249
    %1251 = vrot.lane.b32.xlu0 %v1228, 120
    %v1252 = vpop.permute.xlu0 %1251
    %v1261 = vadd.f32 %v1172, %v1238
    %v1262 = vadd.f32 %v1180, %v1240
    %v1263 = vadd.f32 %v1188, %v1242
    %v1264 = vadd.f32 %v1196, %v1244
    %v1265 = vadd.f32 %v1204, %v1246
    %v1266 = vadd.f32 %v1212, %v1248
    %v1267 = vadd.f32 %v1220, %v1250
    %v1268 = vadd.f32 %v1228, %v1252
    %1269 = vrot.lane.b32.xlu0 %v1172, 112
    %v1270 = vpop.permute.xlu0 %1269
    %1271 = vrot.lane.b32.xlu0 %v1180, 112
    %v1272 = vpop.permute.xlu0 %1271
    %1273 = vrot.lane.b32.xlu0 %v1188, 112
    %v1274 = vpop.permute.xlu0 %1273
    %1275 = vrot.lane.b32.xlu0 %v1196, 112
    %v1276 = vpop.permute.xlu0 %1275
    %1277 = vrot.lane.b32.xlu0 %v1204, 112
    %v1278 = vpop.permute.xlu0 %1277
    %1279 = vrot.lane.b32.xlu0 %v1212, 112
    %v1280 = vpop.permute.xlu0 %1279
    %1281 = vrot.lane.b32.xlu0 %v1220, 112
    %v1282 = vpop.permute.xlu0 %1281
    %1283 = vrot.lane.b32.xlu0 %v1228, 112
    %v1284 = vpop.permute.xlu0 %1283
    %v1293 = vadd.f32 %v1261, %v1270
    %v1294 = vadd.f32 %v1262, %v1272
    %v1295 = vadd.f32 %v1263, %v1274
    %v1296 = vadd.f32 %v1264, %v1276
    %v1297 = vadd.f32 %v1265, %v1278
    %v1298 = vadd.f32 %v1266, %v1280
    %v1299 = vadd.f32 %v1267, %v1282
    %v1300 = vadd.f32 %v1268, %v1284
    %1301 = vrot.lane.b32.xlu0 %v1172, 104
    %v1302 = vpop.permute.xlu0 %1301
    %1303 = vrot.lane.b32.xlu0 %v1180, 104
    %v1304 = vpop.permute.xlu0 %1303
    %1305 = vrot.lane.b32.xlu0 %v1188, 104
    %v1306 = vpop.permute.xlu0 %1305
    %1307 = vrot.lane.b32.xlu0 %v1196, 104
    %v1308 = vpop.permute.xlu0 %1307
    %1309 = vrot.lane.b32.xlu0 %v1204, 104
    %v1310 = vpop.permute.xlu0 %1309
    %1311 = vrot.lane.b32.xlu0 %v1212, 104
    %v1312 = vpop.permute.xlu0 %1311
    %1313 = vrot.lane.b32.xlu0 %v1220, 104
    %v1314 = vpop.permute.xlu0 %1313
    %1315 = vrot.lane.b32.xlu0 %v1228, 104
    %v1316 = vpop.permute.xlu0 %1315
    %v1325 = vadd.f32 %v1293, %v1302
    %v1326 = vadd.f32 %v1294, %v1304
    %v1327 = vadd.f32 %v1295, %v1306
    %v1328 = vadd.f32 %v1296, %v1308
    %v1329 = vadd.f32 %v1297, %v1310
    %v1330 = vadd.f32 %v1298, %v1312
    %v1331 = vadd.f32 %v1299, %v1314
    %v1332 = vadd.f32 %v1300, %v1316
    %1333 = vrot.lane.b32.xlu0 %v1172, 96
    %v1334 = vpop.permute.xlu0 %1333
    %1335 = vrot.lane.b32.xlu0 %v1180, 96
    %v1336 = vpop.permute.xlu0 %1335
    %1337 = vrot.lane.b32.xlu0 %v1188, 96
    %v1338 = vpop.permute.xlu0 %1337
    %1339 = vrot.lane.b32.xlu0 %v1196, 96
    %v1340 = vpop.permute.xlu0 %1339
    %1341 = vrot.lane.b32.xlu0 %v1204, 96
    %v1342 = vpop.permute.xlu0 %1341
    %1343 = vrot.lane.b32.xlu0 %v1212, 96
    %v1344 = vpop.permute.xlu0 %1343
    %1345 = vrot.lane.b32.xlu0 %v1220, 96
    %v1346 = vpop.permute.xlu0 %1345
    %1347 = vrot.lane.b32.xlu0 %v1228, 96
    %v1348 = vpop.permute.xlu0 %1347
    %v1357 = vadd.f32 %v1325, %v1334
    %v1358 = vadd.f32 %v1326, %v1336
    %v1359 = vadd.f32 %v1327, %v1338
    %v1360 = vadd.f32 %v1328, %v1340
    %v1361 = vadd.f32 %v1329, %v1342
    %v1362 = vadd.f32 %v1330, %v1344
    %v1363 = vadd.f32 %v1331, %v1346
    %v1364 = vadd.f32 %v1332, %v1348
    %1365 = vrot.lane.b32.xlu0 %v1172, 88
    %v1366 = vpop.permute.xlu0 %1365
    %1367 = vrot.lane.b32.xlu0 %v1180, 88
    %v1368 = vpop.permute.xlu0 %1367
    %1369 = vrot.lane.b32.xlu0 %v1188, 88
    %v1370 = vpop.permute.xlu0 %1369
    %1371 = vrot.lane.b32.xlu0 %v1196, 88
    %v1372 = vpop.permute.xlu0 %1371
    %1373 = vrot.lane.b32.xlu0 %v1204, 88
    %v1374 = vpop.permute.xlu0 %1373
    %1375 = vrot.lane.b32.xlu0 %v1212, 88
    %v1376 = vpop.permute.xlu0 %1375
    %1377 = vrot.lane.b32.xlu0 %v1220, 88
    %v1378 = vpop.permute.xlu0 %1377
    %1379 = vrot.lane.b32.xlu0 %v1228, 88
    %v1380 = vpop.permute.xlu0 %1379
    %v1389 = vadd.f32 %v1357, %v1366
    %v1390 = vadd.f32 %v1358, %v1368
    %v1391 = vadd.f32 %v1359, %v1370
    %v1392 = vadd.f32 %v1360, %v1372
    %v1393 = vadd.f32 %v1361, %v1374
    %v1394 = vadd.f32 %v1362, %v1376
    %v1395 = vadd.f32 %v1363, %v1378
    %v1396 = vadd.f32 %v1364, %v1380
    %1397 = vrot.lane.b32.xlu0 %v1172, 80
    %v1398 = vpop.permute.xlu0 %1397
    %1399 = vrot.lane.b32.xlu0 %v1180, 80
    %v1400 = vpop.permute.xlu0 %1399
    %1401 = vrot.lane.b32.xlu0 %v1188, 80
    %v1402 = vpop.permute.xlu0 %1401
    %1403 = vrot.lane.b32.xlu0 %v1196, 80
    %v1404 = vpop.permute.xlu0 %1403
    %1405 = vrot.lane.b32.xlu0 %v1204, 80
    %v1406 = vpop.permute.xlu0 %1405
    %1407 = vrot.lane.b32.xlu0 %v1212, 80
    %v1408 = vpop.permute.xlu0 %1407
    %1409 = vrot.lane.b32.xlu0 %v1220, 80
    %v1410 = vpop.permute.xlu0 %1409
    %1411 = vrot.lane.b32.xlu0 %v1228, 80
    %v1412 = vpop.permute.xlu0 %1411
    %v1421 = vadd.f32 %v1389, %v1398
    %v1422 = vadd.f32 %v1390, %v1400
    %v1423 = vadd.f32 %v1391, %v1402
    %v1424 = vadd.f32 %v1392, %v1404
    %v1425 = vadd.f32 %v1393, %v1406
    %v1426 = vadd.f32 %v1394, %v1408
    %v1427 = vadd.f32 %v1395, %v1410
    %v1428 = vadd.f32 %v1396, %v1412
    %1429 = vrot.lane.b32.xlu0 %v1172, 72
    %v1430 = vpop.permute.xlu0 %1429
    %1431 = vrot.lane.b32.xlu0 %v1180, 72
    %v1432 = vpop.permute.xlu0 %1431
    %1433 = vrot.lane.b32.xlu0 %v1188, 72
    %v1434 = vpop.permute.xlu0 %1433
    %1435 = vrot.lane.b32.xlu0 %v1196, 72
    %v1436 = vpop.permute.xlu0 %1435
    %1437 = vrot.lane.b32.xlu0 %v1204, 72
    %v1438 = vpop.permute.xlu0 %1437
    %1439 = vrot.lane.b32.xlu0 %v1212, 72
    %v1440 = vpop.permute.xlu0 %1439
    %1441 = vrot.lane.b32.xlu0 %v1220, 72
    %v1442 = vpop.permute.xlu0 %1441
    %1443 = vrot.lane.b32.xlu0 %v1228, 72
    %v1444 = vpop.permute.xlu0 %1443
    %v1453 = vadd.f32 %v1421, %v1430
    %v1454 = vadd.f32 %v1422, %v1432
    %v1455 = vadd.f32 %v1423, %v1434
    %v1456 = vadd.f32 %v1424, %v1436
    %v1457 = vadd.f32 %v1425, %v1438
    %v1458 = vadd.f32 %v1426, %v1440
    %v1459 = vadd.f32 %v1427, %v1442
    %v1460 = vadd.f32 %v1428, %v1444
    %1461 = vrot.lane.b32.xlu0 %v1172, 64
    %v1462 = vpop.permute.xlu0 %1461
    %1463 = vrot.lane.b32.xlu0 %v1180, 64
    %v1464 = vpop.permute.xlu0 %1463
    %1465 = vrot.lane.b32.xlu0 %v1188, 64
    %v1466 = vpop.permute.xlu0 %1465
    %1467 = vrot.lane.b32.xlu0 %v1196, 64
    %v1468 = vpop.permute.xlu0 %1467
    %1469 = vrot.lane.b32.xlu0 %v1204, 64
    %v1470 = vpop.permute.xlu0 %1469
    %1471 = vrot.lane.b32.xlu0 %v1212, 64
    %v1472 = vpop.permute.xlu0 %1471
    %1473 = vrot.lane.b32.xlu0 %v1220, 64
    %v1474 = vpop.permute.xlu0 %1473
    %1475 = vrot.lane.b32.xlu0 %v1228, 64
    %v1476 = vpop.permute.xlu0 %1475
    %v1485 = vadd.f32 %v1453, %v1462
    %v1486 = vadd.f32 %v1454, %v1464
    %v1487 = vadd.f32 %v1455, %v1466
    %v1488 = vadd.f32 %v1456, %v1468
    %v1489 = vadd.f32 %v1457, %v1470
    %v1490 = vadd.f32 %v1458, %v1472
    %v1491 = vadd.f32 %v1459, %v1474
    %v1492 = vadd.f32 %v1460, %v1476
    %1493 = vrot.lane.b32.xlu0 %v1172, 56
    %v1494 = vpop.permute.xlu0 %1493
    %1495 = vrot.lane.b32.xlu0 %v1180, 56
    %v1496 = vpop.permute.xlu0 %1495
    %1497 = vrot.lane.b32.xlu0 %v1188, 56
    %v1498 = vpop.permute.xlu0 %1497
    %1499 = vrot.lane.b32.xlu0 %v1196, 56
    %v1500 = vpop.permute.xlu0 %1499
    %1501 = vrot.lane.b32.xlu0 %v1204, 56
    %v1502 = vpop.permute.xlu0 %1501
    %1503 = vrot.lane.b32.xlu0 %v1212, 56
    %v1504 = vpop.permute.xlu0 %1503
    %1505 = vrot.lane.b32.xlu0 %v1220, 56
    %v1506 = vpop.permute.xlu0 %1505
    %1507 = vrot.lane.b32.xlu0 %v1228, 56
    %v1508 = vpop.permute.xlu0 %1507
    %v1517 = vadd.f32 %v1485, %v1494
    %v1518 = vadd.f32 %v1486, %v1496
    %v1519 = vadd.f32 %v1487, %v1498
    %v1520 = vadd.f32 %v1488, %v1500
    %v1521 = vadd.f32 %v1489, %v1502
    %v1522 = vadd.f32 %v1490, %v1504
    %v1523 = vadd.f32 %v1491, %v1506
    %v1524 = vadd.f32 %v1492, %v1508
    %1525 = vrot.lane.b32.xlu0 %v1172, 48
    %v1526 = vpop.permute.xlu0 %1525
    %1527 = vrot.lane.b32.xlu0 %v1180, 48
    %v1528 = vpop.permute.xlu0 %1527
    %1529 = vrot.lane.b32.xlu0 %v1188, 48
    %v1530 = vpop.permute.xlu0 %1529
    %1531 = vrot.lane.b32.xlu0 %v1196, 48
    %v1532 = vpop.permute.xlu0 %1531
    %1533 = vrot.lane.b32.xlu0 %v1204, 48
    %v1534 = vpop.permute.xlu0 %1533
    %1535 = vrot.lane.b32.xlu0 %v1212, 48
    %v1536 = vpop.permute.xlu0 %1535
    %1537 = vrot.lane.b32.xlu0 %v1220, 48
    %v1538 = vpop.permute.xlu0 %1537
    %1539 = vrot.lane.b32.xlu0 %v1228, 48
    %v1540 = vpop.permute.xlu0 %1539
    %v1549 = vadd.f32 %v1517, %v1526
    %v1550 = vadd.f32 %v1518, %v1528
    %v1551 = vadd.f32 %v1519, %v1530
    %v1552 = vadd.f32 %v1520, %v1532
    %v1553 = vadd.f32 %v1521, %v1534
    %v1554 = vadd.f32 %v1522, %v1536
    %v1555 = vadd.f32 %v1523, %v1538
    %v1556 = vadd.f32 %v1524, %v1540
    %1557 = vrot.lane.b32.xlu0 %v1172, 40
    %v1558 = vpop.permute.xlu0 %1557
    %1559 = vrot.lane.b32.xlu0 %v1180, 40
    %v1560 = vpop.permute.xlu0 %1559
    %1561 = vrot.lane.b32.xlu0 %v1188, 40
    %v1562 = vpop.permute.xlu0 %1561
    %1563 = vrot.lane.b32.xlu0 %v1196, 40
    %v1564 = vpop.permute.xlu0 %1563
    %1565 = vrot.lane.b32.xlu0 %v1204, 40
    %v1566 = vpop.permute.xlu0 %1565
    %1567 = vrot.lane.b32.xlu0 %v1212, 40
    %v1568 = vpop.permute.xlu0 %1567
    %1569 = vrot.lane.b32.xlu0 %v1220, 40
    %v1570 = vpop.permute.xlu0 %1569
    %1571 = vrot.lane.b32.xlu0 %v1228, 40
    %v1572 = vpop.permute.xlu0 %1571
    %v1581 = vadd.f32 %v1549, %v1558
    %v1582 = vadd.f32 %v1550, %v1560
    %v1583 = vadd.f32 %v1551, %v1562
    %v1584 = vadd.f32 %v1552, %v1564
    %v1585 = vadd.f32 %v1553, %v1566
    %v1586 = vadd.f32 %v1554, %v1568
    %v1587 = vadd.f32 %v1555, %v1570
    %v1588 = vadd.f32 %v1556, %v1572
    %1589 = vrot.lane.b32.xlu0 %v1172, 32
    %v1590 = vpop.permute.xlu0 %1589
    %1591 = vrot.lane.b32.xlu0 %v1180, 32
    %v1592 = vpop.permute.xlu0 %1591
    %1593 = vrot.lane.b32.xlu0 %v1188, 32
    %v1594 = vpop.permute.xlu0 %1593
    %1595 = vrot.lane.b32.xlu0 %v1196, 32
    %v1596 = vpop.permute.xlu0 %1595
    %1597 = vrot.lane.b32.xlu0 %v1204, 32
    %v1598 = vpop.permute.xlu0 %1597
    %1599 = vrot.lane.b32.xlu0 %v1212, 32
    %v1600 = vpop.permute.xlu0 %1599
    %1601 = vrot.lane.b32.xlu0 %v1220, 32
    %v1602 = vpop.permute.xlu0 %1601
    %1603 = vrot.lane.b32.xlu0 %v1228, 32
    %v1604 = vpop.permute.xlu0 %1603
    %v1613 = vadd.f32 %v1581, %v1590
    %v1614 = vadd.f32 %v1582, %v1592
    %v1615 = vadd.f32 %v1583, %v1594
    %v1616 = vadd.f32 %v1584, %v1596
    %v1617 = vadd.f32 %v1585, %v1598
    %v1618 = vadd.f32 %v1586, %v1600
    %v1619 = vadd.f32 %v1587, %v1602
    %v1620 = vadd.f32 %v1588, %v1604
    %1621 = vrot.lane.b32.xlu0 %v1172, 24
    %v1622 = vpop.permute.xlu0 %1621
    %1623 = vrot.lane.b32.xlu0 %v1180, 24
    %v1624 = vpop.permute.xlu0 %1623
    %1625 = vrot.lane.b32.xlu0 %v1188, 24
    %v1626 = vpop.permute.xlu0 %1625
    %1627 = vrot.lane.b32.xlu0 %v1196, 24
    %v1628 = vpop.permute.xlu0 %1627
    %1629 = vrot.lane.b32.xlu0 %v1204, 24
    %v1630 = vpop.permute.xlu0 %1629
    %1631 = vrot.lane.b32.xlu0 %v1212, 24
    %v1632 = vpop.permute.xlu0 %1631
    %1633 = vrot.lane.b32.xlu0 %v1220, 24
    %v1634 = vpop.permute.xlu0 %1633
    %1635 = vrot.lane.b32.xlu0 %v1228, 24
    %v1636 = vpop.permute.xlu0 %1635
    %v1645 = vadd.f32 %v1613, %v1622
    %v1646 = vadd.f32 %v1614, %v1624
    %v1647 = vadd.f32 %v1615, %v1626
    %v1648 = vadd.f32 %v1616, %v1628
    %v1649 = vadd.f32 %v1617, %v1630
    %v1650 = vadd.f32 %v1618, %v1632
    %v1651 = vadd.f32 %v1619, %v1634
    %v1652 = vadd.f32 %v1620, %v1636
    %v1653 = vmul.f32 %v1645, %v58
    %v1654 = vmul.f32 %v1646, %v549
    %v1655 = vmul.f32 %v1647, %v550
    %v1656 = vmul.f32 %v1648, %v551
    %v1657 = vmul.f32 %v1649, %v552
    %v1658 = vmul.f32 %v1650, %v553
    %v1659 = vmul.f32 %v1651, %v554
    %v1660 = vmul.f32 %v1652, %v555
    %v1669 = vrot.slane %v565, 7
    %vm1670 = vcmask 1041409
    %v1671 = vsel %vm1670, %v1669, %v564
    %v1672 = vrot.slane %v566, 6
    %vm1673 = vcmask 1042434
    %v1674 = vsel %vm1673, %v1672, %v1671
    %v1675 = vrot.slane %v567, 5
    %vm1676 = vcmask 1043459
    %v1677 = vsel %vm1676, %v1675, %v1674
    %v1678 = vrot.slane %v568, 4
    %vm1679 = vcmask 1044484
    %v1680 = vsel %vm1679, %v1678, %v1677
    %v1681 = vrot.slane %v569, 3
    %vm1682 = vcmask 1045509
    %v1683 = vsel %vm1682, %v1681, %v1680
    %v1684 = vrot.slane %v570, 2
    %vm1685 = vcmask 1046534
    %v1686 = vsel %vm1685, %v1684, %v1683
    %v1687 = vrot.slane %v571, 1
    %vm1688 = vcmask 1047559
    %v1689 = vsel %vm1688, %v1687, %v1686
    %v1699 = vrot.slane %v1118, 7
    %v1700 = vsel %vm1670, %v1699, %v1117
    %v1701 = vrot.slane %v1119, 6
    %v1702 = vsel %vm1673, %v1701, %v1700
    %v1703 = vrot.slane %v1120, 5
    %v1704 = vsel %vm1676, %v1703, %v1702
    %v1705 = vrot.slane %v1121, 4
    %v1706 = vsel %vm1679, %v1705, %v1704
    %v1707 = vrot.slane %v1122, 3
    %v1708 = vsel %vm1682, %v1707, %v1706
    %v1709 = vrot.slane %v1123, 2
    %v1710 = vsel %vm1685, %v1709, %v1708
    %v1711 = vrot.slane %v1124, 1
    %v1712 = vsel %vm1688, %v1711, %v1710
    %1713 = vrot.lane.b32.xlu0 %v1712, 24
    %v1714 = vpop.permute.xlu0 %1713
    %v1724 = vrot.slane %v1654, 7
    %v1725 = vsel %vm1670, %v1724, %v1653
    %v1726 = vrot.slane %v1655, 6
    %v1727 = vsel %vm1673, %v1726, %v1725
    %v1728 = vrot.slane %v1656, 5
    %v1729 = vsel %vm1676, %v1728, %v1727
    %v1730 = vrot.slane %v1657, 4
    %v1731 = vsel %vm1679, %v1730, %v1729
    %v1732 = vrot.slane %v1658, 3
    %v1733 = vsel %vm1682, %v1732, %v1731
    %v1734 = vrot.slane %v1659, 2
    %v1735 = vsel %vm1685, %v1734, %v1733
    %v1736 = vrot.slane %v1660, 1
    %v1737 = vsel %vm1688, %v1736, %v1735
    %1738 = vrot.lane.b32.xlu0 %v1737, 48
    %v1739 = vpop.permute.xlu0 %1738
    %vm1741 = vcmask 195584
    %v1742 = vsel %vm1741, %v1689, %v1714
    %vm1743 = vcmask 392192
    %v1744 = vsel %vm1743, %v1742, %v1739
    %vm1745 = vcmask 588800
    %1746 = vst.msk [vmem:[#allocation7] sm:$0xff] %vm1745, %v1744
    // Predicated region
    $region18: #{tpu_custom_call.1} parent=1 // pred_check
      _
    $region19: #{tpu_custom_call.1} parent=1 // pred_check_branch
      %1748 = sbr.rel (0) target = $region21
    $region20: #{tpu_custom_call.1} parent=1 // pred_region
      %1750 = vsyncadd [#allocation4], 0
      %s1752 = sshll.u32 [#allocation7], 4
      %s1753 = int_to_ptr.vmem [resolvable:$true] %s1752
      %s1754 = sshll.u32 %s2, 4
      %s1755 = int_to_ptr.hbm [resolvable:$true] %s1754
      %1757 = dma.vmem_to_hbm [thread:$0]  %s1753, 128, %s1755, [#allocation4]
    $region21: #{tpu_custom_call.1} parent=1 // pred_fallthru
      _
    // Predicated region
    $region22: #{tpu_custom_call.1} parent=1 // pred_check
      _
    $region23: #{tpu_custom_call.1} parent=1 // pred_check_branch
      %1759 = sbr.rel (0) target = $region25
    $region24: #{tpu_custom_call.1} parent=1 // pred_region
      %1761 = dma.done [#allocation4], 128
    $region25: #{tpu_custom_call.1} parent=1 // pred_fallthru
      _
    %1762 = vsyncpa [#allocation3], 1
    %1763 = vsyncpa [#allocation6], 1
    %1764 = vsyncpa [#allocation4], 1

</llo_original>
